<compile_context>
chip_gen: v5e
topology: v5e:2x2
jax: 0.10.0
libtpu: 0.0.40
codegen_flags: <defaults>
</compile_context>

<pallas_src>
import numpy as np
import jax
import jax.numpy as jnp
from jax.experimental import pallas as pl
from jax.experimental.pallas import tpu as pltpu

SIZES = (1, 2, 3, 6)
_NS = tuple(s * s for s in SIZES)                          # pooled grid sizes
_NPAD = tuple(((n + 7) // 8) * 8 for n in _NS)             # sublane-aligned rows
_OFFS = tuple(int(v) for v in np.cumsum((0,) + _NPAD)[:-1])
SUM_N = int(sum(_NPAD))                                    # 72 for (1,2,3,6)


# ---------------------------------------------------------------------------
# Host-side glue: linear operators encoding PyTorch pooling / interp semantics.
# ---------------------------------------------------------------------------
def adaptive_pool_matrix(out_size, in_size):
    """1D AdaptiveAvgPool matrix (out_size, in_size) matching nn.AdaptiveAvgPool2d."""
    P = np.zeros((out_size, in_size), dtype=np.float32)
    for o in range(out_size):
        start = (o * in_size) // out_size
        end = -(-((o + 1) * in_size) // out_size)  # ceil
        P[o, start:end] = 1.0 / (end - start)
    return P


def bilinear_matrix(out_size, in_size):
    """1D bilinear-interp matrix (out_size, in_size), align_corners=False."""
    U = np.zeros((out_size, in_size), dtype=np.float32)
    scale = in_size / out_size
    for o in range(out_size):
        src = max((o + 0.5) * scale - 0.5, 0.0)
        x0 = min(int(np.floor(src)), in_size - 1)
        x1 = min(x0 + 1, in_size - 1)
        frac = src - x0
        U[o, x0] += 1.0 - frac
        U[o, x1] += frac
    return U


# ---------------------------------------------------------------------------
# Pass 1: adaptive pooling (reduction over HW tiles) + fused stage/bottleneck.
# ---------------------------------------------------------------------------
def _pool_kernel(x_ref, p_ref, wf_ref, small_ref, pooled_ref):
    t = pl.program_id(1)

    @pl.when(t == 0)
    def _():
        pooled_ref[...] = jnp.zeros_like(pooled_ref)

    # pooled += P_all[:, tile] @ x[tile]    (SUM_N, THW) @ (THW, C) -> (SUM_N, C)
    pooled_ref[...] += jnp.dot(p_ref[...], x_ref[0].astype(jnp.float32),
                               preferred_element_type=jnp.float32)

    @pl.when(t == pl.num_programs(1) - 1)
    def _():
        pooled = pooled_ref[...]                        # (SUM_N, C) f32
        for i in range(len(SIZES)):                     # 4 tiny fused GEMMs
            off, npad = _OFFS[i], _NPAD[i]              # 8-aligned static slices
            blk = pooled[off:off + npad].astype(wf_ref.dtype)
            small_ref[0, off:off + npad, :] = jnp.dot(
                blk, wf_ref[i], preferred_element_type=jnp.float32)


# ---------------------------------------------------------------------------
# Pass 2: bilinear upsample + identity-branch bottleneck + bias + ReLU.
# ---------------------------------------------------------------------------
def _emit_kernel(x_ref, u_ref, small_ref, wid_ref, bias_ref, o_ref):
    # (THW, SUM_N) @ (SUM_N, Fp): all pyramid branches, already through the
    # bottleneck, brought back to full resolution.
    acc = jnp.dot(u_ref[...], small_ref[0], preferred_element_type=jnp.float32)
    # identity branch of the concat through its bottleneck slice (compute dtype
    # matmul, f32 accumulation).
    acc = acc + jnp.dot(x_ref[0], wid_ref[...], preferred_element_type=jnp.float32)
    acc = acc + bias_ref[...]                            # (1, Fp) broadcast
    o_ref[0] = jnp.maximum(acc, 0.0).astype(o_ref.dtype)


# ---------------------------------------------------------------------------
# Wrapper
# ---------------------------------------------------------------------------
def _pick_tile_hw(hw, c, fp, x_bytes, target=1024, budget_bytes=24 * 1024 * 1024):
    """Largest multiple of 128 dividing hw (<= target) whose double-buffered
    per-step tile footprint fits the VMEM budget; else the full hw."""
    def step_bytes(t):
        # pass-2 dominates: x tile + U tile + out tile, each double-buffered.
        return 2 * t * (c * x_bytes + SUM_N * 4 + fp * 4)

    best = None
    t = 128
    while t <= min(hw, target):
        if hw % t == 0 and step_bytes(t) <= budget_bytes:
            best = t
        t += 128
    return best if best is not None else hw


def psp_forward(x_nchw, params, *, compute_dtype=jnp.float32, tile_hw=None):
    B, C, H, W = x_nchw.shape
    HW = H * W
    Fout = params["wb"].shape[0]
    Fp = ((Fout + 127) // 128) * 128          # lane-dense output stores
    n_stages = len(SIZES)
    x_bytes = jnp.dtype(compute_dtype).itemsize

    if tile_hw is None:
        tile_hw = _pick_tile_hw(HW, C, Fp, x_bytes)
    if not (tile_hw == HW or (HW % tile_hw == 0 and tile_hw % 128 == 0)):
        raise ValueError("tile_hw must divide H*W and be a multiple of 128 "
                         "(or equal H*W).")
    n_t = HW // tile_hw

    # NCHW -> (B, HW, C); channels ride the TPU lane dim.
    x = jnp.transpose(x_nchw, (0, 2, 3, 1)).reshape(B, HW, C).astype(compute_dtype)

    # --- host-side prep: stacked operators + fused weights -----------------
    wbT = np.asarray(params["wb"], np.float32).reshape(Fout, -1).T   # (5C, Fout)
    wbT_p = np.zeros((wbT.shape[0], Fp), np.float32)
    wbT_p[:, :Fout] = wbT
    bias = np.zeros((1, Fp), np.float32)
    bias[0, :Fout] = np.asarray(params["wb_bias"], np.float32)

    P_all = np.zeros((SUM_N, HW), np.float32)   # stacked adaptive-pool operator
    U_all = np.zeros((HW, SUM_N), np.float32)   # stacked bilinear-upsample operator
    Wf = np.zeros((n_stages, C, Fp), np.float32)
    for i, s in enumerate(SIZES):
        ns, off = _NS[i], _OFFS[i]
        P_all[off:off + ns, :] = np.kron(adaptive_pool_matrix(s, H),
                                         adaptive_pool_matrix(s, W))
        U_all[:, off:off + ns] = np.kron(bilinear_matrix(H, s),
                                         bilinear_matrix(W, s))
        Wt = np.asarray(params["stage_w"][i], np.float32).reshape(C, C).T
        # fuse stage conv + that branch's bottleneck slice: (C,C)@(C,Fp)
        Wf[i] = Wt @ wbT_p[i * C:(i + 1) * C]
    wid = wbT_p[n_stages * C:]                  # identity-branch slice (C, Fp)

    P_all = jnp.asarray(P_all)                  # operators stay f32 for fidelity
    U_all = jnp.asarray(U_all)
    bias = jnp.asarray(bias)
    Wf = jnp.asarray(Wf, dtype=compute_dtype)
    wid = jnp.asarray(wid, dtype=compute_dtype)

    cparams = dict(vmem_limit_bytes=32 * 1024 * 1024)   # explicit scoped-VMEM cap

    # --- pass 1: pooling reduction + fused 1x1 convs ------------------------
    # Wf / small use constant index maps, so they are fetched once per batch
    # element and stay resident across the HW reduction.
    small = pl.pallas_call(
        _pool_kernel,
        out_shape=jax.ShapeDtypeStruct((B, SUM_N, Fp), jnp.float32),
        grid_spec=pltpu.PrefetchScalarGridSpec(
            num_scalar_prefetch=0,
            grid=(B, n_t),
            in_specs=[
                pl.BlockSpec((1, tile_hw, C), lambda b, t: (b, t, 0)),       # x
                pl.BlockSpec((SUM_N, tile_hw), lambda b, t: (0, t)),         # P_all
                pl.BlockSpec((n_stages, C, Fp), lambda b, t: (0, 0, 0)),     # Wf
            ],
            out_specs=pl.BlockSpec((1, SUM_N, Fp), lambda b, t: (b, 0, 0)),
            scratch_shapes=[pltpu.VMEM((SUM_N, C), jnp.float32)],
        ),
        compiler_params=pltpu.CompilerParams(
            dimension_semantics=("parallel", "arbitrary"), **cparams),
    )(x, P_all, Wf)

    # --- pass 2: upsample + identity bottleneck + bias + ReLU ---------------
    out = pl.pallas_call(
        _emit_kernel,
        out_shape=jax.ShapeDtypeStruct((B, HW, Fp), jnp.float32),
        grid_spec=pltpu.PrefetchScalarGridSpec(
            num_scalar_prefetch=0,
            grid=(B, n_t),
            in_specs=[
                pl.BlockSpec((1, tile_hw, C), lambda b, t: (b, t, 0)),       # x
                pl.BlockSpec((tile_hw, SUM_N), lambda b, t: (t, 0)),         # U_all
                pl.BlockSpec((1, SUM_N, Fp), lambda b, t: (b, 0, 0)),        # small
                pl.BlockSpec((C, Fp), lambda b, t: (0, 0)),                  # wid
                pl.BlockSpec((1, Fp), lambda b, t: (0, 0)),                  # bias
            ],
            out_specs=pl.BlockSpec((1, tile_hw, Fp), lambda b, t: (b, t, 0)),
        ),
        compiler_params=pltpu.CompilerParams(
            dimension_semantics=("parallel", "parallel"), **cparams),
    )(x, U_all, small, wid, bias)

    # drop the lane padding, (B, HW, Fout) -> NCHW (to match the PyTorch module)
    out = out[..., :Fout]
    return jnp.transpose(out.reshape(B, H, W, Fout), (0, 3, 1, 2))


# ---------------------------------------------------------------------------
# Pure-JAX reference (unfused math, f32) for a correctness check.
# ---------------------------------------------------------------------------
def psp_reference(x_nchw, params):
    B, C, H, W = x_nchw.shape
    Fout = params["wb"].shape[0]
    x = jnp.transpose(x_nchw, (0, 2, 3, 1)).reshape(B, H * W, C).astype(jnp.float32)
    branches = []
    for i, s in enumerate(SIZES):
        P2 = jnp.asarray(np.kron(adaptive_pool_matrix(s, H), adaptive_pool_matrix(s, W)))
        U2 = jnp.asarray(np.kron(bilinear_matrix(H, s), bilinear_matrix(W, s)))
        Wt = params["stage_w"][i].reshape(C, C).T
        pooled = jnp.einsum("sp,bpc->bsc", P2, x)
        convd = pooled @ Wt
        up = jnp.einsum("ps,bsc->bpc", U2, convd)
        branches.append(up)
    branches.append(x)
    cat = jnp.concatenate(branches, axis=-1)
    out = cat @ params["wb"].reshape(Fout, -1).T + params["wb_bias"]
    out = jnp.maximum(out, 0.0)
    return jnp.transpose(out.reshape(B, H, W, Fout), (0, 3, 1, 2))


if __name__ == "__main__":
    key = jax.random.PRNGKey(0)
    B, C, H, W = 2, 4, 16, 16     # small: features=4
    Fout = 32                     # small stand-in for out_features=1024

    k_x, k_w, k_b, *k_stage = jax.random.split(key, 3 + len(SIZES))
    x = jax.random.normal(k_x, (B, C, H, W), dtype=jnp.float32)
    params = {
        # stage convs: Conv2d(features, features, 1, bias=False) -> (C, C, 1, 1)
        "stage_w": [0.1 * jax.random.normal(k, (C, C, 1, 1), jnp.float32) for k in k_stage],
        # bottleneck: Conv2d(features*(len(sizes)+1), out_features, 1) -> (Fout, 5C, 1, 1)
        "wb": 0.1 * jax.random.normal(k_w, (Fout, C * (len(SIZES) + 1), 1, 1), jnp.float32),
        "wb_bias": 0.1 * jax.random.normal(k_b, (Fout,), jnp.float32),
    }

    ref = jax.block_until_ready(psp_reference(x, params))

    # f32 path, auto (VMEM-aware) HW tile selection.
    out = jax.block_until_ready(psp_forward(x, params))
    assert out.shape == (B, Fout, H, W)
    np.testing.assert_allclose(np.asarray(out), np.asarray(ref), rtol=1e-4, atol=1e-4)

    # f32 path, explicit multi-tile HW reduction (exercises the accumulator path).
    out_t = jax.block_until_ready(psp_forward(x, params, tile_hw=128))
    np.testing.assert_allclose(np.asarray(out_t), np.asarray(ref), rtol=1e-4, atol=1e-4)

    # bf16 storage / f32 accumulation path (halves HBM traffic on v6e/v7x).
    out_bf16 = jax.block_until_ready(
        psp_forward(x, params, compute_dtype=jnp.bfloat16, tile_hw=128))
    np.testing.assert_allclose(np.asarray(out_bf16), np.asarray(ref),
                               rtol=5e-2, atol=5e-2)

    print("KERNEL_OK")
</pallas_src>

<mosaic_0001>
module attributes {stable_mosaic.version = 11 : i64} {
  func.func @_pool_kernel(%arg0: i32, %arg1: i32, %arg2: memref<1x256x4xf32, #tpu.memory_space<vmem>>, %arg3: memref<72x256xf32, #tpu.memory_space<vmem>>, %arg4: memref<4x4x128xf32, #tpu.memory_space<vmem>>, %arg5: memref<1x72x128xf32, #tpu.memory_space<vmem>>, %arg6: memref<72x4xf32, #tpu.memory_space<vmem>>) attributes {dimension_semantics = [#tpu.dimension_semantics<parallel>, #tpu.dimension_semantics<arbitrary>], iteration_bounds = array<i64: 2, 1>, scalar_prefetch = 0 : i64, scratch_operands = 1 : i64, tpu.core_type = #tpu.core_type<tc>, window_params = [{transform_indices = @transform_0, window_bounds = array<i64: 1, 256, 4>}, {transform_indices = @transform_1, window_bounds = array<i64: 72, 256>}, {pipeline_mode = #tpu.pipeline_mode<synchronous>, transform_indices = @transform_2, window_bounds = array<i64: 4, 4, 128>}, {transform_indices = @transform_3, window_bounds = array<i64: 1, 72, 128>}]} {
    %c0_i32 = arith.constant 0 : i32
    %0 = arith.cmpi eq, %arg1, %c0_i32 : i32
    %1 = arith.extui %0 : i1 to i32
    %c0_i32_0 = arith.constant 0 : i32
    %2 = arith.cmpi ne, %1, %c0_i32_0 : i32
    scf.if %2 {
      %cst_11 = arith.constant 0.000000e+00 : f32
      %13 = vector.broadcast %cst_11 : f32 to vector<72x4xf32>
      %c0_12 = arith.constant 0 : index
      %c0_13 = arith.constant 0 : index
      %14 = vector.load %arg6[%c0_12, %c0_13] : memref<72x4xf32, #tpu.memory_space<vmem>>, vector<72x4xf32>
      tpu.vector_store %arg6[%c0_12, %c0_13], %13 {strides = array<i32>} : memref<72x4xf32, #tpu.memory_space<vmem>>, vector<72x4xf32>,
    } else {
    }
    %c0 = arith.constant 0 : index
    %c0_1 = arith.constant 0 : index
    %3 = vector.load %arg6[%c0, %c0_1] : memref<72x4xf32, #tpu.memory_space<vmem>>, vector<72x4xf32>
    %c0_2 = arith.constant 0 : index
    %c0_3 = arith.constant 0 : index
    %4 = vector.load %arg3[%c0_2, %c0_3] : memref<72x256xf32, #tpu.memory_space<vmem>>, vector<72x256xf32>
    %c0_4 = arith.constant 0 : index
    %c0_5 = arith.constant 0 : index
    %c0_6 = arith.constant 0 : index
    %5 = vector.load %arg2[%c0_4, %c0_5, %c0_6] : memref<1x256x4xf32, #tpu.memory_space<vmem>>, vector<1x256x4xf32>
    %6 = vector.shape_cast %5 : vector<1x256x4xf32> to vector<256x4xf32>
    %cst = arith.constant dense<0.000000e+00> : vector<72x4xf32>
    %7 = tpu.matmul %4, %6, %cst {dimension_numbers = #tpu.dot_dimension_numbers<[1], [0], [0], [1], [0, 0, 1, 1], [], []>} : vector<72x256xf32>, vector<256x4xf32>, vector<72x4xf32> -> vector<72x4xf32>
    %8 = arith.addf %3, %7 : vector<72x4xf32>
    %c0_7 = arith.constant 0 : index
    %c0_8 = arith.constant 0 : index
    %9 = vector.load %arg6[%c0_7, %c0_8] : memref<72x4xf32, #tpu.memory_space<vmem>>, vector<72x4xf32>
    tpu.vector_store %arg6[%c0_7, %c0_8], %8 {strides = array<i32>} : memref<72x4xf32, #tpu.memory_space<vmem>>, vector<72x4xf32>,
    %c0_i32_9 = arith.constant 0 : i32
    %10 = arith.cmpi eq, %arg1, %c0_i32_9 : i32
    %11 = arith.extui %10 : i1 to i32
    %c0_i32_10 = arith.constant 0 : i32
    %12 = arith.cmpi ne, %11, %c0_i32_10 : i32
    scf.if %12 {
      %c0_11 = arith.constant 0 : index
      %c0_12 = arith.constant 0 : index
      %13 = vector.load %arg6[%c0_11, %c0_12] : memref<72x4xf32, #tpu.memory_space<vmem>>, vector<72x4xf32>
      %14 = vector.extract_strided_slice %13 {offsets = [0, 0], sizes = [8, 4], strides = [1, 1]} : vector<72x4xf32> to vector<8x4xf32>
      %c0_13 = arith.constant 0 : index
      %c0_14 = arith.constant 0 : index
      %c0_15 = arith.constant 0 : index
      %15 = vector.load %arg4[%c0_13, %c0_14, %c0_15] : memref<4x4x128xf32, #tpu.memory_space<vmem>>, vector<1x4x128xf32>
      %16 = vector.shape_cast %15 : vector<1x4x128xf32> to vector<4x128xf32>
      %cst_16 = arith.constant dense<0.000000e+00> : vector<8x128xf32>
      %17 = tpu.matmul %14, %16, %cst_16 {dimension_numbers = #tpu.dot_dimension_numbers<[1], [0], [0], [1], [0, 0, 1, 1], [], []>} : vector<8x4xf32>, vector<4x128xf32>, vector<8x128xf32> -> vector<8x128xf32>
      %c0_17 = arith.constant 0 : index
      %c0_18 = arith.constant 0 : index
      %c0_19 = arith.constant 0 : index
      %18 = vector.load %arg5[%c0_17, %c0_18, %c0_19] : memref<1x72x128xf32, #tpu.memory_space<vmem>>, vector<1x8x128xf32>
      %19 = vector.shape_cast %18 : vector<1x8x128xf32> to vector<8x128xf32>
      %20 = vector.shape_cast %17 : vector<8x128xf32> to vector<1x8x128xf32>
      tpu.vector_store %arg5[%c0_17, %c0_18, %c0_19], %20 {strides = array<i32>} : memref<1x72x128xf32, #tpu.memory_space<vmem>>, vector<1x8x128xf32>,
      %21 = vector.extract_strided_slice %13 {offsets = [8, 0], sizes = [8, 4], strides = [1, 1]} : vector<72x4xf32> to vector<8x4xf32>
      %c1 = arith.constant 1 : index
      %c0_20 = arith.constant 0 : index
      %c0_21 = arith.constant 0 : index
      %22 = vector.load %arg4[%c1, %c0_20, %c0_21] : memref<4x4x128xf32, #tpu.memory_space<vmem>>, vector<1x4x128xf32>
      %23 = vector.shape_cast %22 : vector<1x4x128xf32> to vector<4x128xf32>
      %cst_22 = arith.constant dense<0.000000e+00> : vector<8x128xf32>
      %24 = tpu.matmul %21, %23, %cst_22 {dimension_numbers = #tpu.dot_dimension_numbers<[1], [0], [0], [1], [0, 0, 1, 1], [], []>} : vector<8x4xf32>, vector<4x128xf32>, vector<8x128xf32> -> vector<8x128xf32>
      %c0_23 = arith.constant 0 : index
      %c8 = arith.constant 8 : index
      %c0_24 = arith.constant 0 : index
      %25 = vector.load %arg5[%c0_23, %c8, %c0_24] : memref<1x72x128xf32, #tpu.memory_space<vmem>>, vector<1x8x128xf32>
      %26 = vector.shape_cast %25 : vector<1x8x128xf32> to vector<8x128xf32>
      %27 = vector.shape_cast %24 : vector<8x128xf32> to vector<1x8x128xf32>
      tpu.vector_store %arg5[%c0_23, %c8, %c0_24], %27 {strides = array<i32>} : memref<1x72x128xf32, #tpu.memory_space<vmem>>, vector<1x8x128xf32>,
      %28 = vector.extract_strided_slice %13 {offsets = [16, 0], sizes = [16, 4], strides = [1, 1]} : vector<72x4xf32> to vector<16x4xf32>
      %c2 = arith.constant 2 : index
      %c0_25 = arith.constant 0 : index
      %c0_26 = arith.constant 0 : index
      %29 = vector.load %arg4[%c2, %c0_25, %c0_26] : memref<4x4x128xf32, #tpu.memory_space<vmem>>, vector<1x4x128xf32>
      %30 = vector.shape_cast %29 : vector<1x4x128xf32> to vector<4x128xf32>
      %cst_27 = arith.constant dense<0.000000e+00> : vector<16x128xf32>
      %31 = tpu.matmul %28, %30, %cst_27 {dimension_numbers = #tpu.dot_dimension_numbers<[1], [0], [0], [1], [0, 0, 1, 1], [], []>} : vector<16x4xf32>, vector<4x128xf32>, vector<16x128xf32> -> vector<16x128xf32>
      %c0_28 = arith.constant 0 : index
      %c16 = arith.constant 16 : index
      %c0_29 = arith.constant 0 : index
      %32 = vector.load %arg5[%c0_28, %c16, %c0_29] : memref<1x72x128xf32, #tpu.memory_space<vmem>>, vector<1x16x128xf32>
      %33 = vector.shape_cast %32 : vector<1x16x128xf32> to vector<16x128xf32>
      %34 = vector.shape_cast %31 : vector<16x128xf32> to vector<1x16x128xf32>
      tpu.vector_store %arg5[%c0_28, %c16, %c0_29], %34 {strides = array<i32>} : memref<1x72x128xf32, #tpu.memory_space<vmem>>, vector<1x16x128xf32>,
      %35 = vector.extract_strided_slice %13 {offsets = [32, 0], sizes = [40, 4], strides = [1, 1]} : vector<72x4xf32> to vector<40x4xf32>
      %c3 = arith.constant 3 : index
      %c0_30 = arith.constant 0 : index
      %c0_31 = arith.constant 0 : index
      %36 = vector.load %arg4[%c3, %c0_30, %c0_31] : memref<4x4x128xf32, #tpu.memory_space<vmem>>, vector<1x4x128xf32>
      %37 = vector.shape_cast %36 : vector<1x4x128xf32> to vector<4x128xf32>
      %cst_32 = arith.constant dense<0.000000e+00> : vector<40x128xf32>
      %38 = tpu.matmul %35, %37, %cst_32 {dimension_numbers = #tpu.dot_dimension_numbers<[1], [0], [0], [1], [0, 0, 1, 1], [], []>} : vector<40x4xf32>, vector<4x128xf32>, vector<40x128xf32> -> vector<40x128xf32>
      %c0_33 = arith.constant 0 : index
      %c32 = arith.constant 32 : index
      %c0_34 = arith.constant 0 : index
      %39 = vector.load %arg5[%c0_33, %c32, %c0_34] : memref<1x72x128xf32, #tpu.memory_space<vmem>>, vector<1x40x128xf32>
      %40 = vector.shape_cast %39 : vector<1x40x128xf32> to vector<40x128xf32>
      %41 = vector.shape_cast %38 : vector<40x128xf32> to vector<1x40x128xf32>
      tpu.vector_store %arg5[%c0_33, %c32, %c0_34], %41 {strides = array<i32>} : memref<1x72x128xf32, #tpu.memory_space<vmem>>, vector<1x40x128xf32>,
    } else {
    }
    return
  }
  func.func @transform_0(%arg0: i32, %arg1: i32) -> (i32, i32, i32) {
    %c0_i32 = arith.constant 0 : i32
    %c0_i32_0 = arith.constant 0 : i32
    return %arg0, %arg1, %c0_i32 : i32, i32, i32
  }
  func.func @transform_1(%arg0: i32, %arg1: i32) -> (i32, i32) {
    %c0_i32 = arith.constant 0 : i32
    %c0_i32_0 = arith.constant 0 : i32
    return %c0_i32, %arg1 : i32, i32
  }
  func.func @transform_2(%arg0: i32, %arg1: i32) -> (i32, i32, i32) {
    %c0_i32 = arith.constant 0 : i32
    %c0_i32_0 = arith.constant 0 : i32
    %c0_i32_1 = arith.constant 0 : i32
    %c0_i32_2 = arith.constant 0 : i32
    return %c0_i32, %c0_i32_0, %c0_i32_1 : i32, i32, i32
  }
  func.func @transform_3(%arg0: i32, %arg1: i32) -> (i32, i32, i32) {
    %c0_i32 = arith.constant 0 : i32
    %c0_i32_0 = arith.constant 0 : i32
    %c0_i32_1 = arith.constant 0 : i32
    return %arg0, %c0_i32, %c0_i32_0 : i32, i32, i32
  }
}

</mosaic_0001>

<llo_original>
// kernel: tpu_custom_call.1
$region0: #{tpu_custom_call.1}
  #allocation0 [shape = 'u32[]', space=smem, size = 0x4, offset = 0x4, fixed_abs, tag = 'smem constant byte address 0x4 - core index']
  #allocation1 [shape = 'u32[72,128]{1,0:T(1,128)}', space=vmem, size = 0x9000, scoped, tag = 'internal scratch']
  #allocation2 [shape = 'f32[72,4]{1,0:T(8,128)}', space=vmem, size = 0x9000, scoped, tag = 'scratch operand']
  %s0 = inlined_call_operand.vmem [shape: f32[2,256,4], index: 0, kind: input, shape index: {}]
  %s1 = inlined_call_operand.vmem [shape: f32[72,256], index: 1, kind: input, shape index: {}]
  %s2 = inlined_call_operand.vmem [shape: f32[4,4,128], index: 2, kind: input, shape index: {}]
  %s3 = inlined_call_operand.hbm [shape: f32[2,72,128], index: 3, kind: output, shape index: {}]
  %s4 = sld [smem:[#allocation0]]
  $region53: #{tpu_custom_call.1} parent=0
    _
  %s6 = ssub.s32 1, %s4
  %s7 = scalar_select 0, %s6, %s4
  $region1: #{tpu_custom_call.1} parent=0
    #allocation3 [shape = 'u8[73728]{0}', space=vmem, size = 0x12000, scoped, tag = 'output window, operand 0']
    #allocation4 [shape = 's32[2]{0}', space=sflag, size = 0x8, scoped, tag = 'scoped memory for tpu_custom_call.1']
    %8 = vsyncpa [#allocation4], 0
    %s9 = scalar_lea.sflag [#allocation4], 1
    %10 = vsyncpa %s9, 0
    loop: start=0, step=1, limit=4
    $region2: #{tpu_custom_call.1} parent=1 // loop_pre_header
      _
    $region3: #{tpu_custom_call.1} parent=1 // loop_header
      %s12 = sphi 0, %s16
      %p13 = scmp.ge.s32.totalorder %s12, 4
      %s19 = sphi 0, %s31
      %s20 = sphi 0, %s27
      %s21 = sphi 0, %s19
      %s22 = sphi 0, %s20
      %s23 = sphi 0, %s21
      %s24 = sphi 0, %s22
      %s36 = sphi 0, %s38
      %s39 = sphi 0, %s36
      %s40 = sphi 0, %s39
      %s56 = sphi 0, %s40
      %s62 = sphi 0, %s64
      %s65 = sphi 0, %s62
      %s66 = sphi 0, %s65
      %s82 = sphi 0, %s66
      %s86 = sphi 0, %s86
      %s88 = sphi 0, %s86
      %s89 = sphi 0, %s88
      %s103 = sphi 0, %s89
      %s109 = sphi 0, %s111
      %s112 = sphi 0, %s109
      %s113 = sphi 0, %s112
      %s129 = sphi 0, %s113
    $region4: #{tpu_custom_call.1} parent=1 // loop_header_branch
      %15 = sbr.rel (%p13) target = $region8
    $region5: #{tpu_custom_call.1} parent=1 // loop_body
      %s17 = ssub.s32 %s12, 1
      %s18 = ssub.s32 %s12, 2
      %s25 = sadd.s32 1, %s20
      %p26 = scmp.ge.s32.totalorder %s25, 1
      %s27 = scalar_select %p26, 0, %s25
      %s28 = sadd.s32 1, %s19
      %s29 = scalar_select %p26, %s28, %s19
      %p30 = scmp.ge.s32.totalorder %s29, 2
      %s31 = scalar_select %p30, 0, %s29
      %s32 = ssub.s32 %s19, %s31
      %s33 = ssub.s32 %s20, %s27
      %s34 = sor.u32 %s32, %s33
      %p35 = scmp.eq.s32.totalorder %s34, 0
      %s37 = sadd.s32 %s36, 1
      %s38 = scalar_select %p35, %s36, %s37
      %p41 = pneg %p35
      %p42 = scmp.eq.s32.totalorder %s12, 1
      %p43 = por %p41, %p42
      %p44 = scmp.ne.s32.totalorder %s36, %s39
      %p45 = scmp.eq.s32.totalorder %s12, 0
      %p46 = por %p44, %p45
      %p47 = scmp.ne.s32.totalorder %s36, %s39
      %p48 = scmp.eq.s32.totalorder %s17, 1
      %p49 = por %p47, %p48
      %p50 = scmp.ne.s32.totalorder %s39, %s40
      %p51 = scmp.eq.s32.totalorder %s17, 0
      %p52 = por %p50, %p51
      %p53 = scmp.ne.s32.totalorder %s39, %s40
      %p54 = scmp.eq.s32.totalorder %s18, 1
      %p55 = por %p53, %p54
      %p57 = scmp.ne.s32.totalorder %s40, %s56
      %p58 = scmp.eq.s32.totalorder %s18, 0
      %p59 = por %p57, %p58
      %s60 = ssub.s32 %s20, %s27
      %p61 = scmp.eq.s32.totalorder %s60, 0
      %s63 = sadd.s32 %s62, 1
      %s64 = scalar_select %p61, %s62, %s63
      %p67 = pneg %p61
      %p68 = scmp.eq.s32.totalorder %s12, 1
      %p69 = por %p67, %p68
      %p70 = scmp.ne.s32.totalorder %s62, %s65
      %p71 = scmp.eq.s32.totalorder %s12, 0
      %p72 = por %p70, %p71
      %p73 = scmp.ne.s32.totalorder %s62, %s65
      %p74 = scmp.eq.s32.totalorder %s17, 1
      %p75 = por %p73, %p74
      %p76 = scmp.ne.s32.totalorder %s65, %s66
      %p77 = scmp.eq.s32.totalorder %s17, 0
      %p78 = por %p76, %p77
      %p79 = scmp.ne.s32.totalorder %s65, %s66
      %p80 = scmp.eq.s32.totalorder %s18, 1
      %p81 = por %p79, %p80
      %p83 = scmp.ne.s32.totalorder %s66, %s82
      %p84 = scmp.eq.s32.totalorder %s18, 0
      %p85 = por %p83, %p84
      %s87 = sadd.s32 %s86, 1
      %p90 = scmp.eq.s32.totalorder %s12, 1
      %p91 = scmp.ne.s32.totalorder %s86, %s88
      %p92 = scmp.eq.s32.totalorder %s12, 0
      %p93 = por %p91, %p92
      %p94 = scmp.ne.s32.totalorder %s86, %s88
      %p95 = scmp.eq.s32.totalorder %s17, 1
      %p96 = por %p94, %p95
      %p97 = scmp.ne.s32.totalorder %s88, %s89
      %p98 = scmp.eq.s32.totalorder %s17, 0
      %p99 = por %p97, %p98
      %p100 = scmp.ne.s32.totalorder %s88, %s89
      %p101 = scmp.eq.s32.totalorder %s18, 1
      %p102 = por %p100, %p101
      %p104 = scmp.ne.s32.totalorder %s89, %s103
      %p105 = scmp.eq.s32.totalorder %s18, 0
      %p106 = por %p104, %p105
      %s107 = ssub.s32 %s19, %s31
      %p108 = scmp.eq.s32.totalorder %s107, 0
      %s110 = sadd.s32 %s109, 1
      %s111 = scalar_select %p108, %s109, %s110
      %p114 = pneg %p108
      %p115 = scmp.eq.s32.totalorder %s12, 1
      %p116 = por %p114, %p115
      %p117 = scmp.ne.s32.totalorder %s109, %s112
      %p118 = scmp.eq.s32.totalorder %s12, 0
      %p119 = por %p117, %p118
      %p120 = scmp.ne.s32.totalorder %s109, %s112
      %p121 = scmp.eq.s32.totalorder %s17, 1
      %p122 = por %p120, %p121
      %p123 = scmp.ne.s32.totalorder %s112, %s113
      %p124 = scmp.eq.s32.totalorder %s17, 0
      %p125 = por %p123, %p124
      %p126 = scmp.ne.s32.totalorder %s112, %s113
      %p127 = scmp.eq.s32.totalorder %s18, 1
      %p128 = por %p126, %p127
      %p130 = scmp.ne.s32.totalorder %s113, %s129
      %p131 = scmp.eq.s32.totalorder %s18, 0
      %p132 = por %p130, %p131
      %p133 = scmp.le.s32.totalorder 1, %s12
      %p134 = scmp.lt.s32.totalorder %s12, 3
      %p135 = pnand %p133, %p134
      %p136 = pneg %p135
      // Predicated region
      $region9: #{tpu_custom_call.1} parent=5 // pred_check
        _
      $region10: #{tpu_custom_call.1} parent=5 // pred_check_branch
        %138 = sbr.rel (%p135) target = $region12
      $region11: #{tpu_custom_call.1} parent=5 // pred_region
        %s139 = ssub.s32 %s12, 1
        // Predicated region
        $region13: #{tpu_custom_call.1} parent=11 // pred_check
          %p140 = pneg %p78
        $region14: #{tpu_custom_call.1} parent=11 // pred_check_branch
          %142 = sbr.rel (%p140) target = $region16
        $region15: #{tpu_custom_call.1} parent=11 // pred_region
          %s143 = smul.u32 2, %s22
          %p144 = scmp.lt.s32.totalorder %s143, 1
          %s145 = scalar_select %p144, %s143, 1
          %s146 = smul.addr %s145, 8
          %s147 = scalar_lea.vmem %s1, %s146
          %s148 = smul.u32 2, %s22
        $region16: #{tpu_custom_call.1} parent=11 // pred_fallthru
          _
        // Predicated region
        $region17: #{tpu_custom_call.1} parent=11 // pred_check
          %p149 = pneg %p99
        $region18: #{tpu_custom_call.1} parent=11 // pred_check_branch
          %151 = sbr.rel (%p149) target = $region20
        $region19: #{tpu_custom_call.1} parent=11 // pred_region
          _
        $region20: #{tpu_custom_call.1} parent=11 // pred_fallthru
          _
      $region12: #{tpu_custom_call.1} parent=5 // pred_fallthru
        _
      %p152 = scmp.lt.s32.totalorder %s12, 2
      // Predicated region
      $region21: #{tpu_custom_call.1} parent=5 // pred_check
        %p153 = pneg %p152
      $region22: #{tpu_custom_call.1} parent=5 // pred_check_branch
        %155 = sbr.rel (%p153) target = $region24
      $region23: #{tpu_custom_call.1} parent=5 // pred_region
        // Predicated region
        $region25: #{tpu_custom_call.1} parent=23 // pred_check
          %p156 = pneg %p46
        $region26: #{tpu_custom_call.1} parent=23 // pred_check_branch
          %158 = sbr.rel (%p156) target = $region28
        $region27: #{tpu_custom_call.1} parent=23 // pred_region
          %s159 = smul.u32 32, %s20
          %p160 = scmp.lt.s32.totalorder %s19, 1
          %s161 = scalar_select %p160, %s19, 1
          %p162 = scmp.lt.s32.totalorder %s159, 31
          %s163 = scalar_select %p162, %s159, 31
          %s164 = smul.addr %s161, 32
          %s165 = sadd.s32 %s163, %s164
          %s166 = smul.addr %s165, 8
          %s167 = scalar_lea.vmem %s0, %s166
          %s168 = smul.u32 32, %s20
        $region28: #{tpu_custom_call.1} parent=23 // pred_fallthru
          _
      $region24: #{tpu_custom_call.1} parent=5 // pred_fallthru
        _
      %p169 = scmp.le.s32.totalorder 1, %s12
      %p170 = scmp.lt.s32.totalorder %s12, 3
      %p171 = pnand %p169, %p170
      %p172 = pneg %p171
      // Predicated region
      $region29: #{tpu_custom_call.1} parent=5 // pred_check
        _
      $region30: #{tpu_custom_call.1} parent=5 // pred_check_branch
        %174 = sbr.rel (%p171) target = $region32
      $region31: #{tpu_custom_call.1} parent=5 // pred_region
        %s175 = ssub.s32 %s12, 1
        %s176 = smul.u32 32, %s22
        %p177 = scmp.lt.s32.totalorder %s21, 1
        %s178 = scalar_select %p177, %s21, 1
        %p179 = scmp.lt.s32.totalorder %s176, 31
        %s180 = scalar_select %p179, %s176, 31
        %s181 = smul.addr %s178, 32
        %s182 = sadd.s32 %s180, %s181
        %s183 = smul.addr %s182, 8
        %s184 = scalar_lea.vmem %s0, %s183
        %p185 = pneg %p52
        %p186 = pneg %p49
        %s187 = smul.u32 2, %s22
        %p188 = scmp.lt.s32.totalorder %s187, 1
        %s189 = scalar_select %p188, %s187, 1
        %s190 = smul.addr %s189, 8
        %s191 = scalar_lea.vmem %s1, %s190
        %p192 = pneg %p78
        %p193 = pneg %p75
        %p194 = pneg %p99
        %p195 = pneg %p96
        %p196 = pneg %p125
        %p197 = pneg %p122
        %s198 = sand.u32 %s112, 1
        %s199 = scalar_lea.sflag [#allocation4], %s198
        %s200 = sand.u32 %s112, 1
        %s201 = smul.addr %s200, 72
        %s202 = scalar_lea.vmem [#allocation3], %s201
        %s203 = smul.u32 32, %s22
        %p204 = scmp.lt.s32.totalorder %s21, 1
        %s205 = scalar_select %p204, %s21, 1
        %p206 = scmp.lt.s32.totalorder %s203, 31
        %s207 = scalar_select %p206, %s203, 31
        %s208 = smul.addr %s205, 32
        %s209 = sadd.s32 %s207, %s208
        %s210 = smul.addr %s209, 8
        %s211 = scalar_lea.vmem %s0, %s210
        %s212 = smul.u32 32, %s22
        %s213 = smul.u32 2, %s22
        %p214 = scmp.lt.s32.totalorder %s213, 1
        %s215 = scalar_select %p214, %s213, 1
        %s216 = smul.addr %s215, 8
        %s217 = scalar_lea.vmem %s1, %s216
        %s218 = smul.u32 2, %s22
        %p219 = scmp.eq.s32.totalorder %s22, 0
        // Predicated region
        $region33: #{tpu_custom_call.1} parent=31 // pred_check
          %p220 = pneg %p219
        $region34: #{tpu_custom_call.1} parent=31 // pred_check_branch
          %222 = sbr.rel (%p220) target = $region36
        $region35: #{tpu_custom_call.1} parent=31 // pred_region
          %vm223 = vcmask 31744
          %224 = vst.msk [vmem:[#allocation2] sm:$0xff] %vm223, 0.0
          %225 = vst.msk [vmem:[#allocation2 + $0x8] sm:$0xff] %vm223, 0.0
          %226 = vst.msk [vmem:[#allocation2 + $0x10] sm:$0xff] %vm223, 0.0
          %227 = vst.msk [vmem:[#allocation2 + $0x18] sm:$0xff] %vm223, 0.0
          %228 = vst.msk [vmem:[#allocation2 + $0x20] sm:$0xff] %vm223, 0.0
          %229 = vst.msk [vmem:[#allocation2 + $0x28] sm:$0xff] %vm223, 0.0
          %230 = vst.msk [vmem:[#allocation2 + $0x30] sm:$0xff] %vm223, 0.0
          %231 = vst.msk [vmem:[#allocation2 + $0x38] sm:$0xff] %vm223, 0.0
          %232 = vst.msk [vmem:[#allocation2 + $0x40] sm:$0xff] %vm223, 0.0
        $region36: #{tpu_custom_call.1} parent=31 // pred_fallthru
          _
        %v233 = vld [vmem:[#allocation2] sm:$0xff]
        %v234 = vld [vmem:[#allocation2 + $0x8] sm:$0xff]
        %v235 = vld [vmem:[#allocation2 + $0x10] sm:$0xff]
        %v236 = vld [vmem:[#allocation2 + $0x18] sm:$0xff]
        %v237 = vld [vmem:[#allocation2 + $0x20] sm:$0xff]
        %v238 = vld [vmem:[#allocation2 + $0x28] sm:$0xff]
        %v239 = vld [vmem:[#allocation2 + $0x30] sm:$0xff]
        %v240 = vld [vmem:[#allocation2 + $0x38] sm:$0xff]
        %v241 = vld [vmem:[#allocation2 + $0x40] sm:$0xff]
        %v242 = vld [vmem:[%s217] sm:$0xff]
        %v243 = vld [vmem:[%s217 + $0x8] sm:$0xff]
        %v244 = vld [vmem:[%s217 + $0x10] sm:$0xff]
        %v245 = vld [vmem:[%s217 + $0x18] sm:$0xff]
        %v246 = vld [vmem:[%s217 + $0x20] sm:$0xff]
        %v247 = vld [vmem:[%s217 + $0x28] sm:$0xff]
        %v248 = vld [vmem:[%s217 + $0x30] sm:$0xff]
        %v249 = vld [vmem:[%s217 + $0x38] sm:$0xff]
        %v250 = vld [vmem:[%s217 + $0x40] sm:$0xff]
        %v251 = vld [vmem:[%s217 + $0x48] sm:$0xff]
        %v252 = vld [vmem:[%s217 + $0x50] sm:$0xff]
        %v253 = vld [vmem:[%s217 + $0x58] sm:$0xff]
        %v254 = vld [vmem:[%s217 + $0x60] sm:$0xff]
        %v255 = vld [vmem:[%s217 + $0x68] sm:$0xff]
        %v256 = vld [vmem:[%s217 + $0x70] sm:$0xff]
        %v257 = vld [vmem:[%s217 + $0x78] sm:$0xff]
        %v258 = vld [vmem:[%s217 + $0x80] sm:$0xff]
        %v259 = vld [vmem:[%s217 + $0x88] sm:$0xff]
        %v260 = vld [vmem:[%s211] sm:$0xff]
        %v261 = vld [vmem:[%s211 + $0x8] sm:$0xff]
        %v262 = vld [vmem:[%s211 + $0x10] sm:$0xff]
        %v263 = vld [vmem:[%s211 + $0x18] sm:$0xff]
        %v264 = vld [vmem:[%s211 + $0x20] sm:$0xff]
        %v265 = vld [vmem:[%s211 + $0x28] sm:$0xff]
        %v266 = vld [vmem:[%s211 + $0x30] sm:$0xff]
        %v267 = vld [vmem:[%s211 + $0x38] sm:$0xff]
        %v268 = vld [vmem:[%s211 + $0x40] sm:$0xff]
        %v269 = vld [vmem:[%s211 + $0x48] sm:$0xff]
        %v270 = vld [vmem:[%s211 + $0x50] sm:$0xff]
        %v271 = vld [vmem:[%s211 + $0x58] sm:$0xff]
        %v272 = vld [vmem:[%s211 + $0x60] sm:$0xff]
        %v273 = vld [vmem:[%s211 + $0x68] sm:$0xff]
        %v274 = vld [vmem:[%s211 + $0x70] sm:$0xff]
        %v275 = vld [vmem:[%s211 + $0x78] sm:$0xff]
        %v276 = vld [vmem:[%s211 + $0x80] sm:$0xff]
        %v277 = vld [vmem:[%s211 + $0x88] sm:$0xff]
        %v278 = vld [vmem:[%s211 + $0x90] sm:$0xff]
        %v279 = vld [vmem:[%s211 + $0x98] sm:$0xff]
        %v280 = vld [vmem:[%s211 + $0xa0] sm:$0xff]
        %v281 = vld [vmem:[%s211 + $0xa8] sm:$0xff]
        %v282 = vld [vmem:[%s211 + $0xb0] sm:$0xff]
        %v283 = vld [vmem:[%s211 + $0xb8] sm:$0xff]
        %v284 = vld [vmem:[%s211 + $0xc0] sm:$0xff]
        %v285 = vld [vmem:[%s211 + $0xc8] sm:$0xff]
        %v286 = vld [vmem:[%s211 + $0xd0] sm:$0xff]
        %v287 = vld [vmem:[%s211 + $0xd8] sm:$0xff]
        %v288 = vld [vmem:[%s211 + $0xe0] sm:$0xff]
        %v289 = vld [vmem:[%s211 + $0xe8] sm:$0xff]
        %v290 = vld [vmem:[%s211 + $0xf0] sm:$0xff]
        %v291 = vld [vmem:[%s211 + $0xf8] sm:$0xff]
        %292 = vmatpush.msra.mxu0 %v275
        %293 = vmatpush.msra.mxu0 %v274
        %294 = vmatpush.msra.mxu0 %v273
        %295 = vmatpush.msra.mxu0 %v272
        %296 = vmatpush.msra.mxu0 %v271
        %297 = vmatpush.msra.mxu0 %v270
        %298 = vmatpush.msra.mxu0 %v269
        %299 = vmatpush.msra.mxu0 %v268
        %300 = vmatpush.msra.mxu0 %v267
        %301 = vmatpush.msra.mxu0 %v266
        %302 = vmatpush.msra.mxu0 %v265
        %303 = vmatpush.msra.mxu0 %v264
        %304 = vmatpush.msra.mxu0 %v263
        %305 = vmatpush.msra.mxu0 %v262
        %306 = vmatpush.msra.mxu0 %v261
        %307 = vmatpush.msra.mxu0 %v260
        %308 = vmatmul.f32.gmra.mxu0 %v242
        %v309 = vpop.f32.mrf.mxu0
        %v310 = vadd.f32 0.0, %v309
        %311 = vmatmul.f32.gmra.mxu0 %v244
        %v312 = vpop.f32.mrf.mxu0
        %v313 = vadd.f32 0.0, %v312
        %314 = vmatmul.f32.gmra.mxu0 %v246
        %v315 = vpop.f32.mrf.mxu0
        %v316 = vadd.f32 0.0, %v315
        %317 = vmatmul.f32.gmra.mxu0 %v248
        %v318 = vpop.f32.mrf.mxu0
        %v319 = vadd.f32 0.0, %v318
        %320 = vmatmul.f32.gmra.mxu0 %v250
        %v321 = vpop.f32.mrf.mxu0
        %v322 = vadd.f32 0.0, %v321
        %323 = vmatmul.f32.gmra.mxu0 %v252
        %v324 = vpop.f32.mrf.mxu0
        %v325 = vadd.f32 0.0, %v324
        %326 = vmatmul.f32.gmra.mxu0 %v254
        %v327 = vpop.f32.mrf.mxu0
        %v328 = vadd.f32 0.0, %v327
        %329 = vmatmul.f32.gmra.mxu0 %v256
        %v330 = vpop.f32.mrf.mxu0
        %v331 = vadd.f32 0.0, %v330
        %332 = vmatmul.f32.gmra.mxu0 %v258
        %v333 = vpop.f32.mrf.mxu0
        %v334 = vadd.f32 0.0, %v333
        %335 = vdwg.mxu0
        %336 = vmatpush.msra.mxu0 %v291
        %337 = vmatpush.msra.mxu0 %v290
        %338 = vmatpush.msra.mxu0 %v289
        %339 = vmatpush.msra.mxu0 %v288
        %340 = vmatpush.msra.mxu0 %v287
        %341 = vmatpush.msra.mxu0 %v286
        %342 = vmatpush.msra.mxu0 %v285
        %343 = vmatpush.msra.mxu0 %v284
        %344 = vmatpush.msra.mxu0 %v283
        %345 = vmatpush.msra.mxu0 %v282
        %346 = vmatpush.msra.mxu0 %v281
        %347 = vmatpush.msra.mxu0 %v280
        %348 = vmatpush.msra.mxu0 %v279
        %349 = vmatpush.msra.mxu0 %v278
        %350 = vmatpush.msra.mxu0 %v277
        %351 = vmatpush.msra.mxu0 %v276
        %352 = vmatmul.f32.gmra.mxu0 %v243
        %v353 = vpop.f32.mrf.mxu0
        %v354 = vadd.f32 %v310, %v353
        %355 = vmatmul.f32.gmra.mxu0 %v245
        %v356 = vpop.f32.mrf.mxu0
        %v357 = vadd.f32 %v313, %v356
        %358 = vmatmul.f32.gmra.mxu0 %v247
        %v359 = vpop.f32.mrf.mxu0
        %v360 = vadd.f32 %v316, %v359
        %361 = vmatmul.f32.gmra.mxu0 %v249
        %v362 = vpop.f32.mrf.mxu0
        %v363 = vadd.f32 %v319, %v362
        %364 = vmatmul.f32.gmra.mxu0 %v251
        %v365 = vpop.f32.mrf.mxu0
        %v366 = vadd.f32 %v322, %v365
        %367 = vmatmul.f32.gmra.mxu0 %v253
        %v368 = vpop.f32.mrf.mxu0
        %v369 = vadd.f32 %v325, %v368
        %370 = vmatmul.f32.gmra.mxu0 %v255
        %v371 = vpop.f32.mrf.mxu0
        %v372 = vadd.f32 %v328, %v371
        %373 = vmatmul.f32.gmra.mxu0 %v257
        %v374 = vpop.f32.mrf.mxu0
        %v375 = vadd.f32 %v331, %v374
        %376 = vmatmul.f32.gmra.mxu0 %v259
        %v377 = vpop.f32.mrf.mxu0
        %v378 = vadd.f32 %v334, %v377
        %379 = vdwg.mxu0
        %v380 = vadd.f32 %v233, %v354
        %v381 = vadd.f32 %v234, %v357
        %v382 = vadd.f32 %v235, %v360
        %v383 = vadd.f32 %v236, %v363
        %v384 = vadd.f32 %v237, %v366
        %v385 = vadd.f32 %v238, %v369
        %v386 = vadd.f32 %v239, %v372
        %v387 = vadd.f32 %v240, %v375
        %v388 = vadd.f32 %v241, %v378
        %vm389 = vcmask 31744
        %390 = vst.msk [vmem:[#allocation2] sm:$0xff] %vm389, %v380
        %391 = vst.msk [vmem:[#allocation2 + $0x8] sm:$0xff] %vm389, %v381
        %392 = vst.msk [vmem:[#allocation2 + $0x10] sm:$0xff] %vm389, %v382
        %393 = vst.msk [vmem:[#allocation2 + $0x18] sm:$0xff] %vm389, %v383
        %394 = vst.msk [vmem:[#allocation2 + $0x20] sm:$0xff] %vm389, %v384
        %395 = vst.msk [vmem:[#allocation2 + $0x28] sm:$0xff] %vm389, %v385
        %396 = vst.msk [vmem:[#allocation2 + $0x30] sm:$0xff] %vm389, %v386
        %397 = vst.msk [vmem:[#allocation2 + $0x38] sm:$0xff] %vm389, %v387
        %398 = vst.msk [vmem:[#allocation2 + $0x40] sm:$0xff] %vm389, %v388
        // Predicated region
        $region37: #{tpu_custom_call.1} parent=31 // pred_check
          %p399 = pneg %p219
        $region38: #{tpu_custom_call.1} parent=31 // pred_check_branch
          %401 = sbr.rel (%p399) target = $region40
        $region39: #{tpu_custom_call.1} parent=31 // pred_region
          %v402 = vld [vmem:[#allocation2] sm:$0xff]
          %v403 = vld [vmem:[#allocation2 + $0x8] sm:$0xff]
          %v404 = vld [vmem:[#allocation2 + $0x10] sm:$0xff]
          %v405 = vld [vmem:[#allocation2 + $0x18] sm:$0xff]
          %v406 = vld [vmem:[#allocation2 + $0x20] sm:$0xff]
          %v407 = vld [vmem:[#allocation2 + $0x28] sm:$0xff]
          %v408 = vld [vmem:[#allocation2 + $0x30] sm:$0xff]
          %v409 = vld [vmem:[#allocation2 + $0x38] sm:$0xff]
          %v410 = vld [vmem:[#allocation2 + $0x40] sm:$0xff]
          %v411 = vld [vmem:[%s2] sm:$0xf]
          %v413 = vsel %vm389, %v402, 0
          %vm415 = vcmask 1043456
          %v417 = vsel %vm415, %v411, 0
          %419 = vmatpush.msra.mxu0 0.0
          %420 = vmatpush.msra.mxu0 0.0
          %421 = vmatpush.msra.mxu0 0.0
          %422 = vmatpush.msra.mxu0 0.0
          %423 = vmatpush.msra.mxu0 0.0
          %424 = vmatpush.msra.mxu0 0.0
          %425 = vmatpush.msra.mxu0 0.0
          %426 = vmatpush.msra.mxu0 0.0
          %427 = vmatpush.msra.mxu0 0.0
          %428 = vmatpush.msra.mxu0 0.0
          %429 = vmatpush.msra.mxu0 0.0
          %430 = vmatpush.msra.mxu0 0.0
          %431 = vmatpush.msra.mxu0 0.0
          %432 = vmatpush.msra.mxu0 0.0
          %433 = vmatpush.msra.mxu0 0.0
          %434 = vmatpush.msra.mxu0 %v417
          %435 = vmatmul.f32.gmra.mxu0 %v413
          %v436 = vpop.f32.mrf.mxu0
          %v437 = vadd.f32 0.0, %v436
          %438 = vdwg.mxu0
          %439 = vst [vmem:[%s202] sm:$0xff] %v437
          %s440 = scalar_lea.vmem %s2, 4
          %v441 = vld [vmem:[%s440] sm:$0xf]
          %v443 = vsel %vm389, %v403, 0
          %v446 = vsel %vm415, %v441, 0
          %448 = vmatpush.msra.mxu0 0.0
          %449 = vmatpush.msra.mxu0 0.0
          %450 = vmatpush.msra.mxu0 0.0
          %451 = vmatpush.msra.mxu0 0.0
          %452 = vmatpush.msra.mxu0 0.0
          %453 = vmatpush.msra.mxu0 0.0
          %454 = vmatpush.msra.mxu0 0.0
          %455 = vmatpush.msra.mxu0 0.0
          %456 = vmatpush.msra.mxu0 0.0
          %457 = vmatpush.msra.mxu0 0.0
          %458 = vmatpush.msra.mxu0 0.0
          %459 = vmatpush.msra.mxu0 0.0
          %460 = vmatpush.msra.mxu0 0.0
          %461 = vmatpush.msra.mxu0 0.0
          %462 = vmatpush.msra.mxu0 0.0
          %463 = vmatpush.msra.mxu0 %v446
          %464 = vmatmul.f32.gmra.mxu0 %v443
          %v465 = vpop.f32.mrf.mxu0
          %v466 = vadd.f32 0.0, %v465
          %467 = vdwg.mxu0
          %468 = vst [vmem:[%s202 + $0x8] sm:$0xff] %v466
          %s469 = scalar_lea.vmem %s2, 8
          %v470 = vld [vmem:[%s469] sm:$0xf]
          %v472 = vsel %vm389, %v404, 0
          %v475 = vsel %vm389, %v405, 0
          %v478 = vsel %vm415, %v470, 0
          %480 = vmatpush.msra.mxu0 0.0
          %481 = vmatpush.msra.mxu0 0.0
          %482 = vmatpush.msra.mxu0 0.0
          %483 = vmatpush.msra.mxu0 0.0
          %484 = vmatpush.msra.mxu0 0.0
          %485 = vmatpush.msra.mxu0 0.0
          %486 = vmatpush.msra.mxu0 0.0
          %487 = vmatpush.msra.mxu0 0.0
          %488 = vmatpush.msra.mxu0 0.0
          %489 = vmatpush.msra.mxu0 0.0
          %490 = vmatpush.msra.mxu0 0.0
          %491 = vmatpush.msra.mxu0 0.0
          %492 = vmatpush.msra.mxu0 0.0
          %493 = vmatpush.msra.mxu0 0.0
          %494 = vmatpush.msra.mxu0 0.0
          %495 = vmatpush.msra.mxu0 %v478
          %496 = vmatmul.f32.gmra.mxu0 %v472
          %v497 = vpop.f32.mrf.mxu0
          %v498 = vadd.f32 0.0, %v497
          %499 = vmatmul.f32.gmra.mxu0 %v475
          %v500 = vpop.f32.mrf.mxu0
          %v501 = vadd.f32 0.0, %v500
          %502 = vdwg.mxu0
          %503 = vst [vmem:[%s202 + $0x10] sm:$0xff] %v498
          %504 = vst [vmem:[%s202 + $0x18] sm:$0xff] %v501
          %s505 = scalar_lea.vmem %s2, 12
          %v506 = vld [vmem:[%s505] sm:$0xf]
          %v508 = vsel %vm389, %v406, 0
          %v511 = vsel %vm389, %v407, 0
          %v514 = vsel %vm389, %v408, 0
          %v517 = vsel %vm389, %v409, 0
          %v520 = vsel %vm389, %v410, 0
          %v523 = vsel %vm415, %v506, 0
          %525 = vmatpush.msra.mxu0 0.0
          %526 = vmatpush.msra.mxu0 0.0
          %527 = vmatpush.msra.mxu0 0.0
          %528 = vmatpush.msra.mxu0 0.0
          %529 = vmatpush.msra.mxu0 0.0
          %530 = vmatpush.msra.mxu0 0.0
          %531 = vmatpush.msra.mxu0 0.0
          %532 = vmatpush.msra.mxu0 0.0
          %533 = vmatpush.msra.mxu0 0.0
          %534 = vmatpush.msra.mxu0 0.0
          %535 = vmatpush.msra.mxu0 0.0
          %536 = vmatpush.msra.mxu0 0.0
          %537 = vmatpush.msra.mxu0 0.0
          %538 = vmatpush.msra.mxu0 0.0
          %539 = vmatpush.msra.mxu0 0.0
          %540 = vmatpush.msra.mxu0 %v523
          %541 = vmatmul.f32.gmra.mxu0 %v508
          %v542 = vpop.f32.mrf.mxu0
          %v543 = vadd.f32 0.0, %v542
          %544 = vmatmul.f32.gmra.mxu0 %v511
          %v545 = vpop.f32.mrf.mxu0
          %v546 = vadd.f32 0.0, %v545
          %547 = vmatmul.f32.gmra.mxu0 %v514
          %v548 = vpop.f32.mrf.mxu0
          %v549 = vadd.f32 0.0, %v548
          %550 = vmatmul.f32.gmra.mxu0 %v517
          %v551 = vpop.f32.mrf.mxu0
          %v552 = vadd.f32 0.0, %v551
          %553 = vmatmul.f32.gmra.mxu0 %v520
          %v554 = vpop.f32.mrf.mxu0
          %v555 = vadd.f32 0.0, %v554
          %556 = vdwg.mxu0
          %557 = vst [vmem:[%s202 + $0x20] sm:$0xff] %v543
          %558 = vst [vmem:[%s202 + $0x28] sm:$0xff] %v546
          %559 = vst [vmem:[%s202 + $0x30] sm:$0xff] %v549
          %560 = vst [vmem:[%s202 + $0x38] sm:$0xff] %v552
          %561 = vst [vmem:[%s202 + $0x40] sm:$0xff] %v555
        $region40: #{tpu_custom_call.1} parent=31 // pred_fallthru
          _
        %s562 = sand.u32 %s112, 1
        %s563 = scalar_lea.sflag [#allocation4], %s562
        %s564 = sand.u32 %s112, 1
        %s565 = smul.addr %s564, 72
        %s566 = scalar_lea.vmem [#allocation3], %s565
        // Predicated region
        $region41: #{tpu_custom_call.1} parent=31 // pred_check
          %p567 = pneg %p122
        $region42: #{tpu_custom_call.1} parent=31 // pred_check_branch
          %569 = sbr.rel (%p567) target = $region44
        $region43: #{tpu_custom_call.1} parent=31 // pred_region
          %571 = vsyncadd %s563, 0
          %s572 = smul.addr %s21, 9
          %s573 = smul.addr %s572, 8
          %s574 = scalar_lea.hbm %s3, %s573
          %s575 = sshll.u32 %s566, 4
          %s576 = int_to_ptr.vmem [resolvable:$true] %s575
          %s577 = sshll.u32 %s574, 4
          %s578 = int_to_ptr.hbm [resolvable:$true] %s577
          %583 = dma.vmem_to_hbm [thread:$0]  %s576, 1152, %s578, %s563, 128, 128, 8
        $region44: #{tpu_custom_call.1} parent=31 // pred_fallthru
          _
      $region32: #{tpu_custom_call.1} parent=5 // pred_fallthru
        _
      %p584 = scmp.le.s32.totalorder 2, %s12
      // Predicated region
      $region45: #{tpu_custom_call.1} parent=5 // pred_check
        %p585 = pneg %p584
      $region46: #{tpu_custom_call.1} parent=5 // pred_check_branch
        %587 = sbr.rel (%p585) target = $region48
      $region47: #{tpu_custom_call.1} parent=5 // pred_region
        %s588 = ssub.s32 %s12, 2
        // Predicated region
        $region49: #{tpu_custom_call.1} parent=47 // pred_check
          %p589 = pneg %p128
        $region50: #{tpu_custom_call.1} parent=47 // pred_check_branch
          %591 = sbr.rel (%p589) target = $region52
        $region51: #{tpu_custom_call.1} parent=47 // pred_region
          %s592 = sand.u32 %s113, 1
          %s593 = scalar_lea.sflag [#allocation4], %s592
          %s594 = sand.u32 %s113, 1
          %s595 = smul.addr %s594, 72
          %s596 = scalar_lea.vmem [#allocation3], %s595
          %598 = dma.done %s593, 1152
        $region52: #{tpu_custom_call.1} parent=47 // pred_fallthru
          _
      $region48: #{tpu_custom_call.1} parent=5 // pred_fallthru
        _
    $region6: #{tpu_custom_call.1} parent=1 // loop_footer
      %s16 = sadd.s32 1, %s12
    $region7: #{tpu_custom_call.1} parent=1 // loop_footer_branch
      %11 = sbr.rel target = $region3
    $region8: #{tpu_custom_call.1} parent=1 // loop_exit
      _
    %599 = vsyncpa [#allocation4], 1
    %s600 = scalar_lea.sflag [#allocation4], 1
    %601 = vsyncpa %s600, 1

</llo_original>
